<compile_context>
chip_gen: v5e
topology: v5e:2x2
jax: 0.10.0
libtpu: 0.0.40
codegen_flags: <defaults>
</compile_context>

<pallas_src>
import functools

import jax
import jax.numpy as jnp
from jax.experimental import pallas as pl
from jax.experimental.pallas import tpu as pltpu


def _triplet_loss_kernel(o_ref, p_ref, n_ref, out_ref, *,
                         batch, block_rows, steps_per_core, needs_mask):
    c = pl.program_id(0)   # TensorCore split axis ("parallel")
    i = pl.program_id(1)   # batch-tile loop ("arbitrary", output-resident)

    @pl.when(i == 0)
    def _init():
        out_ref[...] = jnp.zeros_like(out_ref)

    # bf16 inputs: keep the elementwise products in bf16 (bf16 VALU exists on
    # v6e/v7x) and accumulate the lane sums in f32. Everything else upcasts
    # to f32 once.
    # TODO(synk): on v5e (no bf16 VPU) force the f32 product path if this
    # kernel ever becomes VALU-bound there; while HBM-bound it is irrelevant.
    if o_ref.dtype == jnp.bfloat16:
        o, p, n = o_ref[...], p_ref[...], n_ref[...]
    else:
        o = o_ref[...].astype(jnp.float32)
        p = p_ref[...].astype(jnp.float32)
        n = n_ref[...].astype(jnp.float32)

    def rowdot(a, b):
        # (TB, D) product -> (TB, 1) f32 lane reduction.
        return jnp.sum((a * b).astype(jnp.float32), axis=-1, keepdims=True)

    # The only (TB, D)-wide work: 5 products + 5 lane reductions.
    soo = rowdot(o, o)
    spp = rowdot(p, p)
    snn = rowdot(n, n)
    sop = rowdot(o, p)
    son = rowdot(o, n)

    # Per-row (TB, 1) scalar math from here on (cheap).
    norm_o = jnp.sqrt(soo)
    norm_p = jnp.sqrt(spp)
    norm_n = jnp.sqrt(snn)
    mo = jnp.maximum(norm_o, 1e-12)   # F.normalize eps
    mp = jnp.maximum(norm_p, 1e-12)
    mn = jnp.maximum(norm_n, 1e-12)

    # cosine_similarity(normalize(a), normalize(b)) with PyTorch's 1e-8 clamp,
    # expressed in terms of the raw dot products / norms:
    #   <a_hat, b_hat> = <a,b> / (ma*mb),  ||a_hat|| = ||a||/ma
    inv_op = 1.0 / (mo * mp)
    inv_on = 1.0 / (mo * mn)
    cos_op = (sop * inv_op) / jnp.maximum(norm_o * norm_p * inv_op, 1e-8)
    cos_on = (son * inv_on) / jnp.maximum(norm_o * norm_n * inv_on, 1e-8)

    # d_ap - d_an + margin  ==  cos_an - cos_ap + 1.0   (margin = 1.0)
    per_row = jnp.maximum(cos_on - cos_op + 1.0, 0.0)   # (TB, 1)

    if needs_mask:
        # Rows past the true batch (partial last block and/or the clamped
        # duplicate block on the second core) must not contribute. jnp.where
        # *selects* 0.0, so NaN/Inf from garbage padded rows cannot leak.
        # This is (TB, 1)-shaped work, negligible vs. the (TB, D) products.
        row = ((c * steps_per_core + i) * block_rows
               + jax.lax.broadcasted_iota(jnp.int32, per_row.shape, 0))
        per_row = jnp.where(row < batch, per_row, 0.0)

    out_ref[...] += jnp.sum(per_row, axis=0, keepdims=True)[None]


def _vmem_config():
    """Returns (block budget bytes, scoped-VMEM limit bytes) per generation."""
    try:
        cap = pltpu.get_tpu_info().vmem_capacity_bytes
    except Exception:  # pragma: no cover - fall back to conservative sizing
        cap = 0
    if cap >= 100 * 1024 * 1024:          # v5e / v6e: 128 MiB physical VMEM
        return 28 * 1024 * 1024, 64 * 1024 * 1024
    # v7x (64 MiB physical) or unknown: stay conservative.
    return 14 * 1024 * 1024, 32 * 1024 * 1024


def _pick_block_rows(feat, budget_bytes):
    # 3 inputs x 2 pipeline buffers + ~3 in-kernel f32 upcast/product
    # temporaries, all sized with a 4-byte itemsize so bf16 inputs still
    # leave headroom.
    bytes_per_row = feat * 4 * (3 * 2 + 3)
    tb = budget_bytes // bytes_per_row
    return int(max(8, (tb // 8) * 8))


def triplet_loss(orig, pos, neg, *, block_rows=None):
    """orig/pos/neg: (B, D) arrays. Returns scalar f32 mean triplet loss.

    Preferred production path (the kernel is HBM-bandwidth bound): supply
    bf16 inputs with D a multiple of 128 (lane-dense). Any dtype / D works.
    """
    B, D = orig.shape
    assert pos.shape == (B, D) and neg.shape == (B, D)

    budget_bytes, vmem_limit = _vmem_config()
    if block_rows is None:
        block_rows = _pick_block_rows(D, budget_bytes)
        # Cap at one core's share of the batch so both v7x TensorCores get
        # work (harmless on single-TC chips).
        per_core = ((B + 1) // 2 + 7) // 8 * 8
        block_rows = min(block_rows, per_core)
    if block_rows >= B:
        block_rows = B                       # single block == full array
    else:
        assert block_rows % 8 == 0, "block_rows must be a multiple of 8"

    num_blocks = pl.cdiv(B, block_rows)
    core_split = 2 if num_blocks >= 2 else 1     # v7x TC split; no-op otherwise
    steps = pl.cdiv(num_blocks, core_split)
    needs_mask = (core_split * steps * block_rows != B)

    def in_map(c, i):
        # Clamp so the (possibly over-provisioned) second core never addresses
        # a block past the array; its extra rows are masked inside the kernel.
        return (jnp.minimum(c * steps + i, num_blocks - 1), 0)

    # Triple-buffer the input DMAs when per-step tiles are small and the loop
    # is long (hides DMA issue latency); otherwise the default 2-deep pipeline.
    tile_bytes = block_rows * D * jnp.dtype(orig.dtype).itemsize
    if tile_bytes < (1 << 19) and steps >= 8:
        in_spec = pl.BlockSpec((block_rows, D), in_map,
                               pipeline_mode=pl.Buffered(3))
    else:
        in_spec = pl.BlockSpec((block_rows, D), in_map)

    kernel = functools.partial(
        _triplet_loss_kernel, batch=B, block_rows=block_rows,
        steps_per_core=steps, needs_mask=needs_mask)

    partials = pl.pallas_call(
        kernel,
        out_shape=jax.ShapeDtypeStruct((core_split, 1, 1), jnp.float32),
        grid=(core_split, steps),
        in_specs=[in_spec, in_spec, in_spec],
        out_specs=pl.BlockSpec((1, 1, 1), lambda c, i: (c, 0, 0)),
        compiler_params=pltpu.CompilerParams(
            dimension_semantics=("parallel", "arbitrary"),
            vmem_limit_bytes=vmem_limit),
    )(orig, pos, neg)
    return jnp.sum(partials) / B


if __name__ == "__main__":
    # Pure-JAX reference (mirrors the PyTorch module exactly, computed in f32).
    def ref(o, p, n):
        o = o.astype(jnp.float32)
        p = p.astype(jnp.float32)
        n = n.astype(jnp.float32)

        def norm(x):
            return x / jnp.maximum(
                jnp.linalg.norm(x, axis=-1, keepdims=True), 1e-12)
        o, p, n = norm(o), norm(p), norm(n)

        def cs(a, b):
            num = jnp.sum(a * b, -1)
            den = jnp.linalg.norm(a, axis=-1) * jnp.linalg.norm(b, axis=-1)
            return num / jnp.maximum(den, 1e-8)

        d_ap = 1.0 - cs(o, p)
        d_an = 1.0 - cs(o, n)
        return jnp.mean(jnp.maximum(d_ap - d_an + 1.0, 0.0))

    key = jax.random.PRNGKey(0)
    ks = jax.random.split(key, 9)

    # 1) Small f32 case consistent with the module (B=8 triplets, hidden=32);
    #    single block, single core.
    B, D = 8, 32
    orig = jax.random.normal(ks[0], (B, D), dtype=jnp.float32)
    pos = jax.random.normal(ks[1], (B, D), dtype=jnp.float32)
    neg = jax.random.normal(ks[2], (B, D), dtype=jnp.float32)
    loss = triplet_loss(orig, pos, neg)
    jax.block_until_ready(loss)
    expected = ref(orig, pos, neg)
    assert jnp.allclose(loss, expected, atol=1e-5, rtol=1e-5), (loss, expected)

    # 2) Tiled path: B not a multiple of the tile -> 2-core split, clamped
    #    trailing block, masked remainder.
    B2, D2 = 20, 32
    orig2 = jax.random.normal(ks[3], (B2, D2), dtype=jnp.float32)
    pos2 = jax.random.normal(ks[4], (B2, D2), dtype=jnp.float32)
    neg2 = jax.random.normal(ks[5], (B2, D2), dtype=jnp.float32)
    loss2 = triplet_loss(orig2, pos2, neg2, block_rows=8)
    jax.block_until_ready(loss2)
    expected2 = ref(orig2, pos2, neg2)
    assert jnp.allclose(loss2, expected2, atol=1e-5, rtol=1e-5), (loss2, expected2)

    # 3) Preferred production path: bf16 inputs, lane-dense D (multiple of 128),
    #    2-core batch split with bf16 products / f32 accumulation.
    B3, D3 = 64, 128
    orig3 = jax.random.normal(ks[6], (B3, D3), jnp.float32).astype(jnp.bfloat16)
    pos3 = jax.random.normal(ks[7], (B3, D3), jnp.float32).astype(jnp.bfloat16)
    neg3 = jax.random.normal(ks[8], (B3, D3), jnp.float32).astype(jnp.bfloat16)
    loss3 = triplet_loss(orig3, pos3, neg3)
    jax.block_until_ready(loss3)
    expected3 = ref(orig3, pos3, neg3)
    assert jnp.allclose(loss3, expected3, atol=3e-2, rtol=3e-2), (loss3, expected3)

    print("KERNEL_OK")
</pallas_src>

<mosaic_0001>
module attributes {stable_mosaic.version = 11 : i64} {
  func.func @_triplet_loss_kernel(%arg0: i32, %arg1: i32, %arg2: memref<8x32xf32, #tpu.memory_space<vmem>>, %arg3: memref<8x32xf32, #tpu.memory_space<vmem>>, %arg4: memref<8x32xf32, #tpu.memory_space<vmem>>, %arg5: memref<1x1x1xf32, #tpu.memory_space<vmem>>) attributes {dimension_semantics = [#tpu.dimension_semantics<parallel>, #tpu.dimension_semantics<arbitrary>], iteration_bounds = array<i64: 1, 1>, scalar_prefetch = 0 : i64, scratch_operands = 0 : i64, tpu.core_type = #tpu.core_type<tc>, window_params = [{transform_indices = @transform_0, window_bounds = array<i64: 8, 32>}, {transform_indices = @transform_1, window_bounds = array<i64: 8, 32>}, {transform_indices = @transform_2, window_bounds = array<i64: 8, 32>}, {transform_indices = @transform_3, window_bounds = array<i64: 1, 1, 1>}]} {
    %c0_i32 = arith.constant 0 : i32
    %0 = arith.cmpi eq, %arg1, %c0_i32 : i32
    %1 = arith.extui %0 : i1 to i32
    %c0_i32_0 = arith.constant 0 : i32
    %2 = arith.cmpi ne, %1, %c0_i32_0 : i32
    scf.if %2 {
      %cst_26 = arith.constant 0.000000e+00 : f32
      %59 = vector.broadcast %cst_26 : f32 to vector<1x1x1xf32>
      %c0_27 = arith.constant 0 : index
      %c0_28 = arith.constant 0 : index
      %c0_29 = arith.constant 0 : index
      %60 = vector.load %arg5[%c0_27, %c0_28, %c0_29] : memref<1x1x1xf32, #tpu.memory_space<vmem>>, vector<1x1x1xf32>
      tpu.vector_store %arg5[%c0_27, %c0_28, %c0_29], %59 {strides = array<i32>} : memref<1x1x1xf32, #tpu.memory_space<vmem>>, vector<1x1x1xf32>,
    } else {
    }
    %c0 = arith.constant 0 : index
    %c0_1 = arith.constant 0 : index
    %3 = vector.load %arg2[%c0, %c0_1] : memref<8x32xf32, #tpu.memory_space<vmem>>, vector<8x32xf32>
    %c0_2 = arith.constant 0 : index
    %c0_3 = arith.constant 0 : index
    %4 = vector.load %arg3[%c0_2, %c0_3] : memref<8x32xf32, #tpu.memory_space<vmem>>, vector<8x32xf32>
    %c0_4 = arith.constant 0 : index
    %c0_5 = arith.constant 0 : index
    %5 = vector.load %arg4[%c0_4, %c0_5] : memref<8x32xf32, #tpu.memory_space<vmem>>, vector<8x32xf32>
    %6 = arith.mulf %3, %3 : vector<8x32xf32>
    %cst = arith.constant dense<0.000000e+00> : vector<8xf32>
    %7 = vector.multi_reduction <add>, %6, %cst [1] : vector<8x32xf32> to vector<8xf32>
    %8 = vector.shape_cast %7 : vector<8xf32> to vector<8x1xf32>
    %9 = arith.mulf %4, %4 : vector<8x32xf32>
    %cst_6 = arith.constant dense<0.000000e+00> : vector<8xf32>
    %10 = vector.multi_reduction <add>, %9, %cst_6 [1] : vector<8x32xf32> to vector<8xf32>
    %11 = vector.shape_cast %10 : vector<8xf32> to vector<8x1xf32>
    %12 = arith.mulf %5, %5 : vector<8x32xf32>
    %cst_7 = arith.constant dense<0.000000e+00> : vector<8xf32>
    %13 = vector.multi_reduction <add>, %12, %cst_7 [1] : vector<8x32xf32> to vector<8xf32>
    %14 = vector.shape_cast %13 : vector<8xf32> to vector<8x1xf32>
    %15 = arith.mulf %3, %4 : vector<8x32xf32>
    %cst_8 = arith.constant dense<0.000000e+00> : vector<8xf32>
    %16 = vector.multi_reduction <add>, %15, %cst_8 [1] : vector<8x32xf32> to vector<8xf32>
    %17 = vector.shape_cast %16 : vector<8xf32> to vector<8x1xf32>
    %18 = arith.mulf %3, %5 : vector<8x32xf32>
    %cst_9 = arith.constant dense<0.000000e+00> : vector<8xf32>
    %19 = vector.multi_reduction <add>, %18, %cst_9 [1] : vector<8x32xf32> to vector<8xf32>
    %20 = vector.shape_cast %19 : vector<8xf32> to vector<8x1xf32>
    %21 = math.sqrt %8 : vector<8x1xf32>
    %22 = math.sqrt %11 : vector<8x1xf32>
    %23 = math.sqrt %14 : vector<8x1xf32>
    %cst_10 = arith.constant 9.99999996E-13 : f32
    %24 = vector.broadcast %cst_10 : f32 to vector<8x1xf32>
    %25 = arith.maximumf %21, %24 : vector<8x1xf32>
    %cst_11 = arith.constant 9.99999996E-13 : f32
    %26 = vector.broadcast %cst_11 : f32 to vector<8x1xf32>
    %27 = arith.maximumf %22, %26 : vector<8x1xf32>
    %cst_12 = arith.constant 9.99999996E-13 : f32
    %28 = vector.broadcast %cst_12 : f32 to vector<8x1xf32>
    %29 = arith.maximumf %23, %28 : vector<8x1xf32>
    %30 = arith.mulf %25, %27 : vector<8x1xf32>
    %cst_13 = arith.constant 1.000000e+00 : f32
    %31 = vector.broadcast %cst_13 : f32 to vector<8x1xf32>
    %32 = arith.divf %31, %30 : vector<8x1xf32>
    %33 = arith.mulf %25, %29 : vector<8x1xf32>
    %cst_14 = arith.constant 1.000000e+00 : f32
    %34 = vector.broadcast %cst_14 : f32 to vector<8x1xf32>
    %35 = arith.divf %34, %33 : vector<8x1xf32>
    %36 = arith.mulf %17, %32 : vector<8x1xf32>
    %37 = arith.mulf %21, %22 : vector<8x1xf32>
    %38 = arith.mulf %37, %32 : vector<8x1xf32>
    %cst_15 = arith.constant 9.99999993E-9 : f32
    %39 = vector.broadcast %cst_15 : f32 to vector<8x1xf32>
    %40 = arith.maximumf %38, %39 : vector<8x1xf32>
    %41 = arith.divf %36, %40 : vector<8x1xf32>
    %42 = arith.mulf %20, %35 : vector<8x1xf32>
    %43 = arith.mulf %21, %23 : vector<8x1xf32>
    %44 = arith.mulf %43, %35 : vector<8x1xf32>
    %cst_16 = arith.constant 9.99999993E-9 : f32
    %45 = vector.broadcast %cst_16 : f32 to vector<8x1xf32>
    %46 = arith.maximumf %44, %45 : vector<8x1xf32>
    %47 = arith.divf %42, %46 : vector<8x1xf32>
    %48 = arith.subf %47, %41 : vector<8x1xf32>
    %cst_17 = arith.constant 1.000000e+00 : f32
    %49 = vector.broadcast %cst_17 : f32 to vector<8x1xf32>
    %50 = arith.addf %48, %49 : vector<8x1xf32>
    %cst_18 = arith.constant 0.000000e+00 : f32
    %51 = vector.broadcast %cst_18 : f32 to vector<8x1xf32>
    %52 = arith.maximumf %50, %51 : vector<8x1xf32>
    %c0_19 = arith.constant 0 : index
    %c0_20 = arith.constant 0 : index
    %c0_21 = arith.constant 0 : index
    %53 = vector.load %arg5[%c0_19, %c0_20, %c0_21] : memref<1x1x1xf32, #tpu.memory_space<vmem>>, vector<1x1x1xf32>
    %cst_22 = arith.constant dense<0.000000e+00> : vector<1xf32>
    %54 = vector.multi_reduction <add>, %52, %cst_22 [0] : vector<8x1xf32> to vector<1xf32>
    %55 = vector.shape_cast %54 : vector<1xf32> to vector<1x1xf32>
    %56 = vector.shape_cast %55 : vector<1x1xf32> to vector<1x1x1xf32>
    %57 = arith.addf %53, %56 : vector<1x1x1xf32>
    %c0_23 = arith.constant 0 : index
    %c0_24 = arith.constant 0 : index
    %c0_25 = arith.constant 0 : index
    %58 = vector.load %arg5[%c0_23, %c0_24, %c0_25] : memref<1x1x1xf32, #tpu.memory_space<vmem>>, vector<1x1x1xf32>
    tpu.vector_store %arg5[%c0_23, %c0_24, %c0_25], %57 {strides = array<i32>} : memref<1x1x1xf32, #tpu.memory_space<vmem>>, vector<1x1x1xf32>,
    return
  }
  func.func @transform_0(%arg0: i32, %arg1: i32) -> (i32, i32) {
    %c1_i32 = arith.constant 1 : i32
    %0 = arith.muli %arg0, %c1_i32 : i32
    %1 = arith.addi %0, %arg1 : i32
    %c0_i32 = arith.constant 0 : i32
    %2 = arith.minsi %1, %c0_i32 : i32
    %c0_i32_0 = arith.constant 0 : i32
    %c0_i32_1 = arith.constant 0 : i32
    return %2, %c0_i32_0 : i32, i32
  }
  func.func @transform_1(%arg0: i32, %arg1: i32) -> (i32, i32) {
    %c1_i32 = arith.constant 1 : i32
    %0 = arith.muli %arg0, %c1_i32 : i32
    %1 = arith.addi %0, %arg1 : i32
    %c0_i32 = arith.constant 0 : i32
    %2 = arith.minsi %1, %c0_i32 : i32
    %c0_i32_0 = arith.constant 0 : i32
    %c0_i32_1 = arith.constant 0 : i32
    return %2, %c0_i32_0 : i32, i32
  }
  func.func @transform_2(%arg0: i32, %arg1: i32) -> (i32, i32) {
    %c1_i32 = arith.constant 1 : i32
    %0 = arith.muli %arg0, %c1_i32 : i32
    %1 = arith.addi %0, %arg1 : i32
    %c0_i32 = arith.constant 0 : i32
    %2 = arith.minsi %1, %c0_i32 : i32
    %c0_i32_0 = arith.constant 0 : i32
    %c0_i32_1 = arith.constant 0 : i32
    return %2, %c0_i32_0 : i32, i32
  }
  func.func @transform_3(%arg0: i32, %arg1: i32) -> (i32, i32, i32) {
    %c0_i32 = arith.constant 0 : i32
    %c0_i32_0 = arith.constant 0 : i32
    %c0_i32_1 = arith.constant 0 : i32
    return %arg0, %c0_i32, %c0_i32_0 : i32, i32, i32
  }
}

</mosaic_0001>

<llo_original>
// kernel: tpu_custom_call.1
$region0: #{tpu_custom_call.1}
  #allocation0 [shape = 'u32[]', space=smem, size = 0x4, offset = 0x4, fixed_abs, tag = 'smem constant byte address 0x4 - core index']
  #allocation1 [shape = 'u32[72,128]{1,0:T(1,128)}', space=vmem, size = 0x9000, scoped, tag = 'internal scratch']
  %s0 = inlined_call_operand.hbm [shape: f32[8,32], index: 0, kind: input, shape index: {}]
  %s1 = inlined_call_operand.hbm [shape: f32[8,32], index: 1, kind: input, shape index: {}]
  %s2 = inlined_call_operand.hbm [shape: f32[8,32], index: 2, kind: input, shape index: {}]
  %s3 = inlined_call_operand.hbm [shape: f32[1,1,1], index: 3, kind: output, shape index: {}]
  %s4 = sld [smem:[#allocation0]]
  $region38: #{tpu_custom_call.1} parent=0
    _
  %s6 = ssub.s32 1, %s4
  %s7 = scalar_select 0, %s6, %s4
  $region1: #{tpu_custom_call.1} parent=0
    #allocation2 [shape = 'u8[4096]{0}', space=vmem, size = 0x1000, scoped, tag = 'input window, operand 0, single buffered']
    #allocation3 [shape = 's32[1]{0}', space=sflag, size = 0x4, scoped, tag = 'scoped memory for tpu_custom_call.1']
    #allocation4 [shape = 's32[1]{0}', space=sflag, size = 0x4, scoped, tag = 'scoped memory for tpu_custom_call.1']
    #allocation5 [shape = 'u8[4096]{0}', space=vmem, size = 0x1000, scoped, tag = 'input window, operand 1, single buffered']
    #allocation6 [shape = 's32[1]{0}', space=sflag, size = 0x4, scoped, tag = 'scoped memory for tpu_custom_call.1']
    #allocation7 [shape = 'u8[4096]{0}', space=vmem, size = 0x1000, scoped, tag = 'input window, operand 2, single buffered']
    #allocation8 [shape = 'u8[512]{0}', space=vmem, size = 0x400, scoped, tag = 'output window, operand 0, single buffered']
    %8 = vsyncpa [#allocation3], 0
    %9 = vsyncpa [#allocation6], 0
    %10 = vsyncpa [#allocation4], 0
    // Predicated region
    $region2: #{tpu_custom_call.1} parent=1 // pred_check
      _
    $region3: #{tpu_custom_call.1} parent=1 // pred_check_branch
      %12 = sbr.rel (0) target = $region5
    $region4: #{tpu_custom_call.1} parent=1 // pred_region
      %s13 = sadd.s32 0, 0
      %p14 = scmp.lt.s32.totalorder %s13, 0
      %s15 = scalar_select %p14, %s13, 0
      %17 = vsyncadd [#allocation3], 0
      %s18 = smul.addr %s15, 8
      %s19 = scalar_lea.hbm %s0, %s18
      %s21 = sshll.u32 %s19, 4
      %s22 = int_to_ptr.hbm [resolvable:$true] %s21
      %s23 = sshll.u32 [#allocation2], 4
      %s24 = int_to_ptr.vmem [resolvable:$true] %s23
      %26 = dma.hbm_to_vmem [thread:$0]  %s22, 128, %s24, [#allocation3]
    $region5: #{tpu_custom_call.1} parent=1 // pred_fallthru
      _
    // Predicated region
    $region6: #{tpu_custom_call.1} parent=1 // pred_check
      _
    $region7: #{tpu_custom_call.1} parent=1 // pred_check_branch
      %28 = sbr.rel (0) target = $region9
    $region8: #{tpu_custom_call.1} parent=1 // pred_region
      %s29 = sadd.s32 0, 0
      %p30 = scmp.lt.s32.totalorder %s29, 0
      %s31 = scalar_select %p30, %s29, 0
      %33 = vsyncadd [#allocation6], 0
      %s34 = smul.addr %s31, 8
      %s35 = scalar_lea.hbm %s1, %s34
      %s37 = sshll.u32 %s35, 4
      %s38 = int_to_ptr.hbm [resolvable:$true] %s37
      %s39 = sshll.u32 [#allocation5], 4
      %s40 = int_to_ptr.vmem [resolvable:$true] %s39
      %42 = dma.hbm_to_vmem [thread:$0]  %s38, 128, %s40, [#allocation6]
    $region9: #{tpu_custom_call.1} parent=1 // pred_fallthru
      _
    // Predicated region
    $region10: #{tpu_custom_call.1} parent=1 // pred_check
      _
    $region11: #{tpu_custom_call.1} parent=1 // pred_check_branch
      %44 = sbr.rel (0) target = $region13
    $region12: #{tpu_custom_call.1} parent=1 // pred_region
      %s45 = sadd.s32 0, 0
      %p46 = scmp.lt.s32.totalorder %s45, 0
      %s47 = scalar_select %p46, %s45, 0
      %49 = vsyncadd [#allocation6], 0
      %s50 = smul.addr %s47, 8
      %s51 = scalar_lea.hbm %s2, %s50
      %s53 = sshll.u32 %s51, 4
      %s54 = int_to_ptr.hbm [resolvable:$true] %s53
      %s55 = sshll.u32 [#allocation7], 4
      %s56 = int_to_ptr.vmem [resolvable:$true] %s55
      %58 = dma.hbm_to_vmem [thread:$0]  %s54, 128, %s56, [#allocation6]
    $region13: #{tpu_custom_call.1} parent=1 // pred_fallthru
      _
    // Predicated region
    $region14: #{tpu_custom_call.1} parent=1 // pred_check
      _
    $region15: #{tpu_custom_call.1} parent=1 // pred_check_branch
      %60 = sbr.rel (0) target = $region17
    $region16: #{tpu_custom_call.1} parent=1 // pred_region
      %62 = dma.done [#allocation3], 128
    $region17: #{tpu_custom_call.1} parent=1 // pred_fallthru
      _
    // Predicated region
    $region18: #{tpu_custom_call.1} parent=1 // pred_check
      _
    $region19: #{tpu_custom_call.1} parent=1 // pred_check_branch
      %64 = sbr.rel (0) target = $region21
    $region20: #{tpu_custom_call.1} parent=1 // pred_region
      %66 = dma.done [#allocation6], 128
    $region21: #{tpu_custom_call.1} parent=1 // pred_fallthru
      _
    // Predicated region
    $region22: #{tpu_custom_call.1} parent=1 // pred_check
      _
    $region23: #{tpu_custom_call.1} parent=1 // pred_check_branch
      %68 = sbr.rel (0) target = $region25
    $region24: #{tpu_custom_call.1} parent=1 // pred_region
      %70 = dma.done [#allocation6], 128
    $region25: #{tpu_custom_call.1} parent=1 // pred_fallthru
      _
    %s71 = sadd.s32 0, 0
    %p72 = scmp.lt.s32.totalorder %s71, 0
    %s73 = scalar_select %p72, %s71, 0
    %s74 = sadd.s32 0, 0
    %p75 = scmp.lt.s32.totalorder %s74, 0
    %s76 = scalar_select %p75, %s74, 0
    %s77 = sadd.s32 0, 0
    %p78 = scmp.lt.s32.totalorder %s77, 0
    %s79 = scalar_select %p78, %s77, 0
    %p80 = scmp.eq.s32.totalorder 0, 0
    // Predicated region
    $region26: #{tpu_custom_call.1} parent=1 // pred_check
      %p81 = pneg %p80
    $region27: #{tpu_custom_call.1} parent=1 // pred_check_branch
      %83 = sbr.rel (%p81) target = $region29
    $region28: #{tpu_custom_call.1} parent=1 // pred_region
      %vm84 = vcmask 0
      %85 = vst.msk [vmem:[#allocation8] sm:$0x1] %vm84, 0.0
    $region29: #{tpu_custom_call.1} parent=1 // pred_fallthru
      _
    %v86 = vld [vmem:[#allocation2] sm:$0xff]
    %v87 = vld [vmem:[#allocation5] sm:$0xff]
    %v88 = vld [vmem:[#allocation7] sm:$0xff]
    %v89 = vmul.f32 %v86, %v86
    %vm90 = vcmask 261120
    %v91 = vsel %vm90, %v89, 0.0
    %92 = vadd.xlane.f32.xlu0 %v91
    %v93 = vpop.xlane.xlu0 %92
    %v94 = vmul.f32 %v87, %v87
    %v95 = vsel %vm90, %v94, 0.0
    %96 = vadd.xlane.f32.xlu0 %v95
    %v97 = vpop.xlane.xlu0 %96
    %v98 = vmul.f32 %v88, %v88
    %v99 = vsel %vm90, %v98, 0.0
    %100 = vadd.xlane.f32.xlu0 %v99
    %v101 = vpop.xlane.xlu0 %100
    %v102 = vmul.f32 %v86, %v87
    %v103 = vsel %vm90, %v102, 0.0
    %104 = vadd.xlane.f32.xlu0 %v103
    %v105 = vpop.xlane.xlu0 %104
    %v106 = vmul.f32 %v86, %v88
    %v107 = vsel %vm90, %v106, 0.0
    %108 = vadd.xlane.f32.xlu0 %v107
    %v109 = vpop.xlane.xlu0 %108
    %v110 = vrsqrt.pop %v93
    %v111 = vmul.f32 %v110, %v93
    %v112 = vmul.f32 %v111, %v110
    %v113 = vmul.f32 0.5, %v112
    %v114 = vsub.f32 1.5, %v113
    %v115 = vmul.f32 %v110, %v114
    %v116 = vmul.f32 %v93, %v115
    %vm117 = vcmp.eq.f32.partialorder %v93, inf
    %v118 = vsel %vm117, %v93, %v116
    %vm119 = vcmp.eq.f32.partialorder %v93, 0.0
    %v120 = vand.u32 %v93, 2147483648
    %v121 = vsel %vm119, %v120, %v118
    %v122 = vrsqrt.pop %v97
    %v123 = vmul.f32 %v122, %v97
    %v124 = vmul.f32 %v123, %v122
    %v125 = vmul.f32 0.5, %v124
    %v126 = vsub.f32 1.5, %v125
    %v127 = vmul.f32 %v122, %v126
    %v128 = vmul.f32 %v97, %v127
    %vm129 = vcmp.eq.f32.partialorder %v97, inf
    %v130 = vsel %vm129, %v97, %v128
    %vm131 = vcmp.eq.f32.partialorder %v97, 0.0
    %v132 = vand.u32 %v97, 2147483648
    %v133 = vsel %vm131, %v132, %v130
    %v134 = vrsqrt.pop %v101
    %v135 = vmul.f32 %v134, %v101
    %v136 = vmul.f32 %v135, %v134
    %v137 = vmul.f32 0.5, %v136
    %v138 = vsub.f32 1.5, %v137
    %v139 = vmul.f32 %v134, %v138
    %v140 = vmul.f32 %v101, %v139
    %vm141 = vcmp.eq.f32.partialorder %v101, inf
    %v142 = vsel %vm141, %v101, %v140
    %vm143 = vcmp.eq.f32.partialorder %v101, 0.0
    %v144 = vand.u32 %v101, 2147483648
    %v145 = vsel %vm143, %v144, %v142
    %v146 = vmax.f32 %v121, 1e-12
    %v147 = vmax.f32 %v133, 1e-12
    %v148 = vmax.f32 %v145, 1e-12
    %v149 = vmul.f32 %v146, %v147
    %v150 = vrcp.pop %v149
    %v151 = vmul.f32 %v149, %v150
    %v152 = vsub.f32 1.0, %v151
    %v153 = vmul.f32 %v150, %v152
    %v154 = vadd.f32 %v150, %v153
    %vm155 = vweird.f32 %v149
    %vm156 = vweird.f32 %v150
    %vm157 = vmor %vm155, %vm156
    %v158 = vsel %vm157, %v150, %v154
    %v159 = vand.u32 2147483647, %v149
    %vm160 = vcmp.eq.f32.partialorder %v159, 8.507059e+37
    %v161 = vand.u32 %v149, 2147483648
    %v162 = vor.u32 1.1754944e-38, %v161
    %v163 = vsel %vm160, %v162, %v158
    %v164 = vmul.f32 1.0, %v163
    %v165 = vmul.f32 %v146, %v148
    %v166 = vrcp.pop %v165
    %v167 = vmul.f32 %v165, %v166
    %v168 = vsub.f32 1.0, %v167
    %v169 = vmul.f32 %v166, %v168
    %v170 = vadd.f32 %v166, %v169
    %vm171 = vweird.f32 %v165
    %vm172 = vweird.f32 %v166
    %vm173 = vmor %vm171, %vm172
    %v174 = vsel %vm173, %v166, %v170
    %v175 = vand.u32 2147483647, %v165
    %vm176 = vcmp.eq.f32.partialorder %v175, 8.507059e+37
    %v177 = vand.u32 %v165, 2147483648
    %v178 = vor.u32 1.1754944e-38, %v177
    %v179 = vsel %vm176, %v178, %v174
    %v180 = vmul.f32 1.0, %v179
    %v181 = vmul.f32 %v105, %v164
    %v182 = vmul.f32 %v121, %v133
    %v183 = vmul.f32 %v182, %v164
    %v184 = vmax.f32 %v183, 1e-08
    %v185 = vrcp.pop %v184
    %v186 = vmul.f32 %v184, %v185
    %v187 = vsub.f32 1.0, %v186
    %v188 = vmul.f32 %v185, %v187
    %v189 = vadd.f32 %v185, %v188
    %vm190 = vweird.f32 %v184
    %vm191 = vweird.f32 %v185
    %vm192 = vmor %vm190, %vm191
    %v193 = vsel %vm192, %v185, %v189
    %v194 = vand.u32 2147483647, %v184
    %vm195 = vcmp.eq.f32.partialorder %v194, 8.507059e+37
    %v196 = vand.u32 %v184, 2147483648
    %v197 = vor.u32 1.1754944e-38, %v196
    %v198 = vsel %vm195, %v197, %v193
    %v199 = vmul.f32 %v181, %v198
    %v200 = vmul.f32 %v109, %v180
    %v201 = vmul.f32 %v121, %v145
    %v202 = vmul.f32 %v201, %v180
    %v203 = vmax.f32 %v202, 1e-08
    %v204 = vrcp.pop %v203
    %v205 = vmul.f32 %v203, %v204
    %v206 = vsub.f32 1.0, %v205
    %v207 = vmul.f32 %v204, %v206
    %v208 = vadd.f32 %v204, %v207
    %vm209 = vweird.f32 %v203
    %vm210 = vweird.f32 %v204
    %vm211 = vmor %vm209, %vm210
    %v212 = vsel %vm211, %v204, %v208
    %v213 = vand.u32 2147483647, %v203
    %vm214 = vcmp.eq.f32.partialorder %v213, 8.507059e+37
    %v215 = vand.u32 %v203, 2147483648
    %v216 = vor.u32 1.1754944e-38, %v215
    %v217 = vsel %vm214, %v216, %v212
    %v218 = vmul.f32 %v200, %v217
    %v219 = vsub.f32 %v218, %v199
    %v220 = vadd.f32 %v219, 1.0
    %v221 = vmax.f32 %v220, 0.0
    %v222 = vld [vmem:[#allocation8] sm:$0x1]
    %v223 = vrot.slane %v221, 4
    %v224 = vadd.f32 %v221, %v223
    %v225 = vrot.slane %v224, 2
    %v226 = vadd.f32 %v224, %v225
    %v227 = vrot.slane %v226, 1
    %v228 = vadd.f32 %v226, %v227
    %v229 = vadd.f32 %v222, %v228
    %vm230 = vcmask 0
    %231 = vst.msk [vmem:[#allocation8] sm:$0x1] %vm230, %v229
    // Predicated region
    $region30: #{tpu_custom_call.1} parent=1 // pred_check
      _
    $region31: #{tpu_custom_call.1} parent=1 // pred_check_branch
      %233 = sbr.rel (0) target = $region33
    $region32: #{tpu_custom_call.1} parent=1 // pred_region
      %235 = vsyncadd [#allocation4], 0
      %s237 = sshll.u32 [#allocation8], 4
      %s238 = int_to_ptr.vmem [resolvable:$true] %s237
      %s239 = sshll.u32 %s3, 4
      %s240 = int_to_ptr.hbm [resolvable:$true] %s239
      %242 = dma.vmem_to_hbm [thread:$0]  %s238, 16, %s240, [#allocation4]
    $region33: #{tpu_custom_call.1} parent=1 // pred_fallthru
      _
    // Predicated region
    $region34: #{tpu_custom_call.1} parent=1 // pred_check
      _
    $region35: #{tpu_custom_call.1} parent=1 // pred_check_branch
      %244 = sbr.rel (0) target = $region37
    $region36: #{tpu_custom_call.1} parent=1 // pred_region
      %246 = dma.done [#allocation4], 16
    $region37: #{tpu_custom_call.1} parent=1 // pred_fallthru
      _
    %247 = vsyncpa [#allocation3], 1
    %248 = vsyncpa [#allocation6], 1
    %249 = vsyncpa [#allocation4], 1

</llo_original>
